<compile_context>
chip_gen: v7x
topology: tpu7x:2x2x1
jax: 0.10.0
libtpu: 0.0.40
codegen_flags: <defaults>
</compile_context>

<pallas_src>
import functools

import jax
import jax.numpy as jnp
import numpy as np
from jax import lax
from jax.experimental import pallas as pl
from jax.experimental.pallas import tpu as pltpu

LN_EPS = 1e-5   # nn.LayerNorm default
LANE = 128
SUBLANE = 8


def _round_up(n, m):
    return ((n + m - 1) // m) * m


def actor_kernel(x_ref, w_ref, v_ref, o_ref, *, h1, h2):
    """x: [TB, P]  w: [3, P, P]  v: [8, P] = (b1, g1, be1, b2, g2, be2, b3, 0)  o: [TB, P]."""
    x = x_ref[...]
    v = v_ref[...]

    def linear_ln_relu(h, w, b, g, be, width):
        # Linear: padded K rows / N cols of w (and padded b) are zero -> padded lanes
        # of z are exactly zero, so 128-lane sums equal sums over the `width` valid lanes.
        z = jnp.dot(h, w, preferred_element_type=jnp.float32) + b
        # LayerNorm over `width` lanes: two independent reductions (co-issuable in XLU),
        # var = E[z^2] - mean^2, clamped at 0 before rsqrt.
        inv_n = 1.0 / float(width)
        mean = jnp.sum(z, axis=-1, keepdims=True) * inv_n
        msq = jnp.sum(z * z, axis=-1, keepdims=True) * inv_n
        var = jnp.maximum(msq - mean * mean, 0.0)
        inv = lax.rsqrt(var + LN_EPS)
        # Padded lanes: g = be = 0 -> stay exactly 0 after LN (and after ReLU).
        zn = (z - mean) * inv * g + be
        return jnp.maximum(zn, 0.0)

    h = linear_ln_relu(x, w_ref[0], v[0:1, :], v[1:2, :], v[2:3, :], h1)
    h = linear_ln_relu(h, w_ref[1], v[3:4, :], v[4:5, :], v[5:6, :], h2)

    # Output head: Linear -> Tanh. Padded output lanes are tanh(0) = 0; wrapper slices.
    a = jnp.dot(h, w_ref[2], preferred_element_type=jnp.float32) + v[6:7, :]
    o_ref[...] = jnp.tanh(a).astype(o_ref.dtype)


def pack_actor_params(params):
    """Pack the 11 per-layer tensors into 2 lane-dense, zero-padded slabs."""
    state_dim, h1 = params["w1"].shape
    _, h2 = params["w2"].shape
    _, act = params["w3"].shape
    P = _round_up(max(state_dim, h1, h2, act), LANE)
    # TODO(synk): if hidden dims grow so that 3*P*P*4B no longer fits VMEM (v7x: 64 MiB),
    # replace whole-weight blocks with a (tm, tk, tn)-tiled K-reduction grid + accumulator.

    def pad_w(w):
        k, n = w.shape
        return jnp.pad(w.astype(jnp.float32), ((0, P - k), (0, P - n)))

    def pad_v(vec):
        vec = jnp.asarray(vec, jnp.float32).reshape(-1)
        return jnp.pad(vec, (0, P - vec.shape[0]))

    w_slab = jnp.stack([pad_w(params["w1"]), pad_w(params["w2"]), pad_w(params["w3"])])
    v_slab = jnp.stack([
        pad_v(params["b1"]), pad_v(params["g1"]), pad_v(params["be1"]),
        pad_v(params["b2"]), pad_v(params["g2"]), pad_v(params["be2"]),
        pad_v(params["b3"]), jnp.zeros((P,), jnp.float32),
    ])
    return w_slab, v_slab


@functools.partial(jax.jit,
                   static_argnames=("hidden_dim1", "hidden_dim2", "action_size"))
def actor_forward(x, w_slab, v_slab, *, hidden_dim1, hidden_dim2, action_size):
    B, state_dim = x.shape
    P = int(w_slab.shape[-1])

    # Batch tile: multiple of 8 sublanes, capped at 256 rows so large inference batches
    # become several "parallel" grid steps (megacore-shardable on v7x).
    TB = min(_round_up(B, SUBLANE), 256)
    BP = _round_up(B, TB)
    x_pad = jnp.pad(x.astype(jnp.float32), ((0, BP - B), (0, P - state_dim)))

    kernel = functools.partial(actor_kernel, h1=hidden_dim1, h2=hidden_dim2)

    out_pad = pl.pallas_call(
        kernel,
        out_shape=jax.ShapeDtypeStruct((BP, P), jnp.float32),
        grid=(BP // TB,),
        in_specs=[
            pl.BlockSpec((TB, P), lambda i: (i, 0)),        # x batch tile
            pl.BlockSpec((3, P, P), lambda i: (0, 0, 0)),   # weight slab (resident)
            pl.BlockSpec((8, P), lambda i: (0, 0)),         # bias/LN slab (resident)
        ],
        out_specs=pl.BlockSpec((TB, P), lambda i: (i, 0)),  # lane-dense output block
        compiler_params=pltpu.CompilerParams(
            dimension_semantics=("parallel",)),
    )(x_pad, w_slab, v_slab)

    return out_pad[:B, :action_size]


def init_actor_params(key, state_dim, hidden_dim1, hidden_dim2, action_size):
    """Deterministic init mirroring the PyTorch __init__ (fan-based uniform / 0.003)."""
    k1w, k1b, k2w, k2b, k3w, k3b = jax.random.split(key, 6)
    # PyTorch uses weight.size()[0] == out_features for the bound; reproduce that.
    h1 = 1.0 / np.sqrt(hidden_dim1)
    h2 = 1.0 / np.sqrt(hidden_dim2)
    aw = 0.003

    def u(k, shape, bound):
        return jax.random.uniform(k, shape, jnp.float32, -bound, bound)

    return {
        # weights stored as [in, out] (transposed relative to torch's [out, in])
        "w1": u(k1w, (state_dim, hidden_dim1), h1),
        "b1": u(k1b, (hidden_dim1,), h1),
        "g1": jnp.ones((hidden_dim1,), jnp.float32),
        "be1": jnp.zeros((hidden_dim1,), jnp.float32),
        "w2": u(k2w, (hidden_dim1, hidden_dim2), h2),
        "b2": u(k2b, (hidden_dim2,), h2),
        "g2": jnp.ones((hidden_dim2,), jnp.float32),
        "be2": jnp.zeros((hidden_dim2,), jnp.float32),
        "w3": u(k3w, (hidden_dim2, action_size), aw),
        "b3": u(k3b, (action_size,), aw),
    }


def actor_forward_ref(x, p):
    """Plain-JAX reference (mirrors the PyTorch forward)."""
    def ln(h, g, b):
        m = jnp.mean(h, axis=-1, keepdims=True)
        v = jnp.mean((h - m) ** 2, axis=-1, keepdims=True)
        return (h - m) / jnp.sqrt(v + LN_EPS) * g + b

    h = x @ p["w1"] + p["b1"]
    h = jnp.maximum(ln(h, p["g1"], p["be1"]), 0.0)
    h = h @ p["w2"] + p["b2"]
    h = jnp.maximum(ln(h, p["g2"], p["be2"]), 0.0)
    return jnp.tanh(h @ p["w3"] + p["b3"])


if __name__ == "__main__":
    key = jax.random.PRNGKey(0)
    kx, kp = jax.random.split(key)

    batch = 8
    state_dim = 16
    hidden_dim1 = 32
    hidden_dim2 = 32
    action_size = 8

    x = jax.random.normal(kx, (batch, state_dim), jnp.float32)
    params = init_actor_params(kp, state_dim, hidden_dim1, hidden_dim2, action_size)
    w_slab, v_slab = pack_actor_params(params)   # pack once, reuse per call

    out = actor_forward(x, w_slab, v_slab,
                        hidden_dim1=hidden_dim1, hidden_dim2=hidden_dim2,
                        action_size=action_size)
    out = jax.block_until_ready(out)

    ref = actor_forward_ref(x, params)
    np.testing.assert_allclose(np.asarray(out), np.asarray(ref), rtol=1e-5, atol=2e-5)

    print("KERNEL_OK")
</pallas_src>

<mosaic_0001>
module attributes {stable_mosaic.version = 11 : i64} {
  func.func @actor_kernel(%arg0: i32, %arg1: memref<8x128xf32, #tpu.memory_space<vmem>>, %arg2: memref<3x128x128xf32, #tpu.memory_space<vmem>>, %arg3: memref<8x128xf32, #tpu.memory_space<vmem>>, %arg4: memref<8x128xf32, #tpu.memory_space<vmem>>) attributes {dimension_semantics = [#tpu.dimension_semantics<parallel>], iteration_bounds = array<i64: 1>, scalar_prefetch = 0 : i64, scratch_operands = 0 : i64, tpu.core_type = #tpu.core_type<tc>, window_params = [{transform_indices = @transform_0, window_bounds = array<i64: 8, 128>}, {pipeline_mode = #tpu.pipeline_mode<synchronous>, transform_indices = @transform_1, window_bounds = array<i64: 3, 128, 128>}, {pipeline_mode = #tpu.pipeline_mode<synchronous>, transform_indices = @transform_2, window_bounds = array<i64: 8, 128>}, {transform_indices = @transform_3, window_bounds = array<i64: 8, 128>}]} {
    %c0 = arith.constant 0 : index
    %c0_0 = arith.constant 0 : index
    %0 = vector.load %arg1[%c0, %c0_0] : memref<8x128xf32, #tpu.memory_space<vmem>>, vector<8x128xf32>
    %c0_1 = arith.constant 0 : index
    %c0_2 = arith.constant 0 : index
    %1 = vector.load %arg3[%c0_1, %c0_2] : memref<8x128xf32, #tpu.memory_space<vmem>>, vector<8x128xf32>
    %c0_3 = arith.constant 0 : index
    %c0_4 = arith.constant 0 : index
    %c0_5 = arith.constant 0 : index
    %2 = vector.load %arg2[%c0_3, %c0_4, %c0_5] : memref<3x128x128xf32, #tpu.memory_space<vmem>>, vector<1x128x128xf32>
    %3 = vector.shape_cast %2 : vector<1x128x128xf32> to vector<128x128xf32>
    %4 = vector.extract_strided_slice %1 {offsets = [0, 0], sizes = [1, 128], strides = [1, 1]} : vector<8x128xf32> to vector<1x128xf32>
    %5 = vector.extract_strided_slice %1 {offsets = [1, 0], sizes = [1, 128], strides = [1, 1]} : vector<8x128xf32> to vector<1x128xf32>
    %6 = vector.extract_strided_slice %1 {offsets = [2, 0], sizes = [1, 128], strides = [1, 1]} : vector<8x128xf32> to vector<1x128xf32>
    %cst = arith.constant dense<0.000000e+00> : vector<8x128xf32>
    %7 = tpu.matmul %0, %3, %cst {dimension_numbers = #tpu.dot_dimension_numbers<[1], [0], [0], [1], [0, 0, 1, 1], [], []>} : vector<8x128xf32>, vector<128x128xf32>, vector<8x128xf32> -> vector<8x128xf32>
    %8 = vector.broadcast %4 : vector<1x128xf32> to vector<8x128xf32>
    %9 = arith.addf %7, %8 : vector<8x128xf32>
    %cst_6 = arith.constant dense<0.000000e+00> : vector<8xf32>
    %10 = vector.multi_reduction <add>, %9, %cst_6 [1] : vector<8x128xf32> to vector<8xf32>
    %11 = vector.shape_cast %10 : vector<8xf32> to vector<8x1xf32>
    %cst_7 = arith.constant 3.125000e-02 : f32
    %12 = vector.broadcast %cst_7 : f32 to vector<8x1xf32>
    %13 = arith.mulf %11, %12 : vector<8x1xf32>
    %14 = arith.mulf %9, %9 : vector<8x128xf32>
    %cst_8 = arith.constant dense<0.000000e+00> : vector<8xf32>
    %15 = vector.multi_reduction <add>, %14, %cst_8 [1] : vector<8x128xf32> to vector<8xf32>
    %16 = vector.shape_cast %15 : vector<8xf32> to vector<8x1xf32>
    %cst_9 = arith.constant 3.125000e-02 : f32
    %17 = vector.broadcast %cst_9 : f32 to vector<8x1xf32>
    %18 = arith.mulf %16, %17 : vector<8x1xf32>
    %19 = arith.mulf %13, %13 : vector<8x1xf32>
    %20 = arith.subf %18, %19 : vector<8x1xf32>
    %cst_10 = arith.constant 0.000000e+00 : f32
    %21 = vector.broadcast %cst_10 : f32 to vector<8x1xf32>
    %22 = arith.maximumf %20, %21 : vector<8x1xf32>
    %cst_11 = arith.constant 9.99999974E-6 : f32
    %23 = vector.broadcast %cst_11 : f32 to vector<8x1xf32>
    %24 = arith.addf %22, %23 : vector<8x1xf32>
    %25 = math.rsqrt %24 : vector<8x1xf32>
    %26 = vector.broadcast %13 : vector<8x1xf32> to vector<8x128xf32>
    %27 = arith.subf %9, %26 : vector<8x128xf32>
    %28 = vector.broadcast %25 : vector<8x1xf32> to vector<8x128xf32>
    %29 = arith.mulf %27, %28 : vector<8x128xf32>
    %30 = vector.broadcast %5 : vector<1x128xf32> to vector<8x128xf32>
    %31 = arith.mulf %29, %30 : vector<8x128xf32>
    %32 = vector.broadcast %6 : vector<1x128xf32> to vector<8x128xf32>
    %33 = arith.addf %31, %32 : vector<8x128xf32>
    %cst_12 = arith.constant 0.000000e+00 : f32
    %34 = vector.broadcast %cst_12 : f32 to vector<8x128xf32>
    %35 = arith.maximumf %33, %34 : vector<8x128xf32>
    %c1 = arith.constant 1 : index
    %c0_13 = arith.constant 0 : index
    %c0_14 = arith.constant 0 : index
    %36 = vector.load %arg2[%c1, %c0_13, %c0_14] : memref<3x128x128xf32, #tpu.memory_space<vmem>>, vector<1x128x128xf32>
    %37 = vector.shape_cast %36 : vector<1x128x128xf32> to vector<128x128xf32>
    %38 = vector.extract_strided_slice %1 {offsets = [3, 0], sizes = [1, 128], strides = [1, 1]} : vector<8x128xf32> to vector<1x128xf32>
    %39 = vector.extract_strided_slice %1 {offsets = [4, 0], sizes = [1, 128], strides = [1, 1]} : vector<8x128xf32> to vector<1x128xf32>
    %40 = vector.extract_strided_slice %1 {offsets = [5, 0], sizes = [1, 128], strides = [1, 1]} : vector<8x128xf32> to vector<1x128xf32>
    %cst_15 = arith.constant dense<0.000000e+00> : vector<8x128xf32>
    %41 = tpu.matmul %35, %37, %cst_15 {dimension_numbers = #tpu.dot_dimension_numbers<[1], [0], [0], [1], [0, 0, 1, 1], [], []>} : vector<8x128xf32>, vector<128x128xf32>, vector<8x128xf32> -> vector<8x128xf32>
    %42 = vector.broadcast %38 : vector<1x128xf32> to vector<8x128xf32>
    %43 = arith.addf %41, %42 : vector<8x128xf32>
    %cst_16 = arith.constant dense<0.000000e+00> : vector<8xf32>
    %44 = vector.multi_reduction <add>, %43, %cst_16 [1] : vector<8x128xf32> to vector<8xf32>
    %45 = vector.shape_cast %44 : vector<8xf32> to vector<8x1xf32>
    %cst_17 = arith.constant 3.125000e-02 : f32
    %46 = vector.broadcast %cst_17 : f32 to vector<8x1xf32>
    %47 = arith.mulf %45, %46 : vector<8x1xf32>
    %48 = arith.mulf %43, %43 : vector<8x128xf32>
    %cst_18 = arith.constant dense<0.000000e+00> : vector<8xf32>
    %49 = vector.multi_reduction <add>, %48, %cst_18 [1] : vector<8x128xf32> to vector<8xf32>
    %50 = vector.shape_cast %49 : vector<8xf32> to vector<8x1xf32>
    %cst_19 = arith.constant 3.125000e-02 : f32
    %51 = vector.broadcast %cst_19 : f32 to vector<8x1xf32>
    %52 = arith.mulf %50, %51 : vector<8x1xf32>
    %53 = arith.mulf %47, %47 : vector<8x1xf32>
    %54 = arith.subf %52, %53 : vector<8x1xf32>
    %cst_20 = arith.constant 0.000000e+00 : f32
    %55 = vector.broadcast %cst_20 : f32 to vector<8x1xf32>
    %56 = arith.maximumf %54, %55 : vector<8x1xf32>
    %cst_21 = arith.constant 9.99999974E-6 : f32
    %57 = vector.broadcast %cst_21 : f32 to vector<8x1xf32>
    %58 = arith.addf %56, %57 : vector<8x1xf32>
    %59 = math.rsqrt %58 : vector<8x1xf32>
    %60 = vector.broadcast %47 : vector<8x1xf32> to vector<8x128xf32>
    %61 = arith.subf %43, %60 : vector<8x128xf32>
    %62 = vector.broadcast %59 : vector<8x1xf32> to vector<8x128xf32>
    %63 = arith.mulf %61, %62 : vector<8x128xf32>
    %64 = vector.broadcast %39 : vector<1x128xf32> to vector<8x128xf32>
    %65 = arith.mulf %63, %64 : vector<8x128xf32>
    %66 = vector.broadcast %40 : vector<1x128xf32> to vector<8x128xf32>
    %67 = arith.addf %65, %66 : vector<8x128xf32>
    %cst_22 = arith.constant 0.000000e+00 : f32
    %68 = vector.broadcast %cst_22 : f32 to vector<8x128xf32>
    %69 = arith.maximumf %67, %68 : vector<8x128xf32>
    %c2 = arith.constant 2 : index
    %c0_23 = arith.constant 0 : index
    %c0_24 = arith.constant 0 : index
    %70 = vector.load %arg2[%c2, %c0_23, %c0_24] : memref<3x128x128xf32, #tpu.memory_space<vmem>>, vector<1x128x128xf32>
    %71 = vector.shape_cast %70 : vector<1x128x128xf32> to vector<128x128xf32>
    %cst_25 = arith.constant dense<0.000000e+00> : vector<8x128xf32>
    %72 = tpu.matmul %69, %71, %cst_25 {dimension_numbers = #tpu.dot_dimension_numbers<[1], [0], [0], [1], [0, 0, 1, 1], [], []>} : vector<8x128xf32>, vector<128x128xf32>, vector<8x128xf32> -> vector<8x128xf32>
    %73 = vector.extract_strided_slice %1 {offsets = [6, 0], sizes = [1, 128], strides = [1, 1]} : vector<8x128xf32> to vector<1x128xf32>
    %74 = vector.broadcast %73 : vector<1x128xf32> to vector<8x128xf32>
    %75 = arith.addf %72, %74 : vector<8x128xf32>
    %76 = math.tanh %75 : vector<8x128xf32>
    %c0_26 = arith.constant 0 : index
    %c0_27 = arith.constant 0 : index
    %77 = vector.load %arg4[%c0_26, %c0_27] : memref<8x128xf32, #tpu.memory_space<vmem>>, vector<8x128xf32>
    tpu.vector_store %arg4[%c0_26, %c0_27], %76 {strides = array<i32>} : memref<8x128xf32, #tpu.memory_space<vmem>>, vector<8x128xf32>,
    return
  }
  func.func @transform_0(%arg0: i32) -> (i32, i32) {
    %c0_i32 = arith.constant 0 : i32
    %c0_i32_0 = arith.constant 0 : i32
    return %arg0, %c0_i32 : i32, i32
  }
  func.func @transform_1(%arg0: i32) -> (i32, i32, i32) {
    %c0_i32 = arith.constant 0 : i32
    %c0_i32_0 = arith.constant 0 : i32
    %c0_i32_1 = arith.constant 0 : i32
    %c0_i32_2 = arith.constant 0 : i32
    return %c0_i32, %c0_i32_0, %c0_i32_1 : i32, i32, i32
  }
  func.func @transform_2(%arg0: i32) -> (i32, i32) {
    %c0_i32 = arith.constant 0 : i32
    %c0_i32_0 = arith.constant 0 : i32
    %c0_i32_1 = arith.constant 0 : i32
    return %c0_i32, %c0_i32_0 : i32, i32
  }
  func.func @transform_3(%arg0: i32) -> (i32, i32) {
    %c0_i32 = arith.constant 0 : i32
    %c0_i32_0 = arith.constant 0 : i32
    return %arg0, %c0_i32 : i32, i32
  }
}

</mosaic_0001>

<llo_original>
// kernel: actor_forward.1
$region0: #{actor_forward.1}
  #allocation0 [shape = 'u32[]', space=smem, size = 0x4, offset = 0x4, fixed_abs, tag = 'smem constant byte address 0x4 - core index']
  #allocation1 [shape = 'u32[144,128]{1,0:T(1,128)}', space=vmem, size = 0x12000, scoped, tag = 'internal scratch']
  %s0 = inlined_call_operand.vmem [shape: f32[8,128], index: 0, kind: input, shape index: {}]
  %s1 = inlined_call_operand.hbm [shape: f32[3,128,128], index: 1, kind: input, shape index: {}]
  %s2 = inlined_call_operand.vmem [shape: f32[8,128], index: 2, kind: input, shape index: {}]
  %s3 = inlined_call_operand.hbm [shape: f32[8,128], index: 3, kind: output, shape index: {}]
  %s4 = sld [smem:[#allocation0]]
  $region26: #{actor_forward.1} parent=0
    _
  %s6 = ssub.s32 1, %s4
  %s7 = scalar_select 0, %s6, %s4
  $region1: #{actor_forward.1} parent=0
    #allocation2 [shape = 'u8[196608]{0}', space=vmem, size = 0x30000, scoped, tag = 'input window, operand 1, single buffered']
    #allocation3 [shape = 's32[1]{0}', space=sflag, size = 0x4, scoped, tag = 'scoped memory for actor_forward.1']
    #allocation4 [shape = 's32[1]{0}', space=sflag, size = 0x4, scoped, tag = 'scoped memory for actor_forward.1']
    #allocation5 [shape = 'u8[4096]{0}', space=vmem, size = 0x1000, scoped, tag = 'output window, operand 0, single buffered']
    %8 = vsyncpa [#allocation3], 0
    %9 = vsyncpa [#allocation4], 0
    // Predicated region
    $region2: #{actor_forward.1} parent=1 // pred_check
      _
    $region3: #{actor_forward.1} parent=1 // pred_check_branch
      %11 = sbr.rel (0) target = $region5
    $region4: #{actor_forward.1} parent=1 // pred_region
      _
    $region5: #{actor_forward.1} parent=1 // pred_fallthru
      _
    // Predicated region
    $region6: #{actor_forward.1} parent=1 // pred_check
      _
    $region7: #{actor_forward.1} parent=1 // pred_check_branch
      %13 = sbr.rel (0) target = $region9
    $region8: #{actor_forward.1} parent=1 // pred_region
      %s15 = ssub.s32 6144, 6144
      %16 = vsyncadd [#allocation3], %s15
      %s17 = sshll.u32 [#allocation2], 4
      %s18 = int_to_ptr.vmem [resolvable:$true] %s17
      %23 = dma.hbm_to_vmem [thread:$0]  %s1, 6144, %s18, [#allocation3], 128, 128, 8
    $region9: #{actor_forward.1} parent=1 // pred_fallthru
      _
    // Predicated region
    $region10: #{actor_forward.1} parent=1 // pred_check
      _
    $region11: #{actor_forward.1} parent=1 // pred_check_branch
      %25 = sbr.rel (0) target = $region13
    $region12: #{actor_forward.1} parent=1 // pred_region
      _
    $region13: #{actor_forward.1} parent=1 // pred_fallthru
      _
    // Predicated region
    $region14: #{actor_forward.1} parent=1 // pred_check
      _
    $region15: #{actor_forward.1} parent=1 // pred_check_branch
      %27 = sbr.rel (0) target = $region17
    $region16: #{actor_forward.1} parent=1 // pred_region
      %28 = dma.done [#allocation3], 6144
    $region17: #{actor_forward.1} parent=1 // pred_fallthru
      _
    %v29 = vld [vmem:[%s0] sm:$0xff]
    %v30 = vld [vmem:[%s2] sm:$0xff]
    %v31 = vld [vmem:[#allocation2] sm:$0xff]
    %v32 = vld [vmem:[#allocation2 + $0x8] sm:$0xff]
    %v33 = vld [vmem:[#allocation2 + $0x10] sm:$0xff]
    %v34 = vld [vmem:[#allocation2 + $0x18] sm:$0xff]
    %v35 = vld [vmem:[#allocation2 + $0x20] sm:$0xff]
    %v36 = vld [vmem:[#allocation2 + $0x28] sm:$0xff]
    %v37 = vld [vmem:[#allocation2 + $0x30] sm:$0xff]
    %v38 = vld [vmem:[#allocation2 + $0x38] sm:$0xff]
    %v39 = vld [vmem:[#allocation2 + $0x40] sm:$0xff]
    %v40 = vld [vmem:[#allocation2 + $0x48] sm:$0xff]
    %v41 = vld [vmem:[#allocation2 + $0x50] sm:$0xff]
    %v42 = vld [vmem:[#allocation2 + $0x58] sm:$0xff]
    %v43 = vld [vmem:[#allocation2 + $0x60] sm:$0xff]
    %v44 = vld [vmem:[#allocation2 + $0x68] sm:$0xff]
    %v45 = vld [vmem:[#allocation2 + $0x70] sm:$0xff]
    %v46 = vld [vmem:[#allocation2 + $0x78] sm:$0xff]
    %v47 = vlaneseq
    %v48 = vshrl.u32 %v47, 7
    %v49 = vsub.s32 0, %v48
    %v50 = vrot.slane %v30, %v49
    %51 = vmatprep.subr.mxu0 0.0
    %52 = vmatpush1.msra.mxu0 %v31
    %53 = vmatprep.subr.mxu0 0.0
    %54 = vmatpush1.msra.mxu0 %v32
    %55 = vmatprep.subr.mxu0 0.0
    %56 = vmatpush1.msra.mxu0 %v33
    %57 = vmatprep.subr.mxu0 0.0
    %58 = vmatpush1.msra.mxu0 %v34
    %59 = vmatprep.subr.mxu0 0.0
    %60 = vmatpush1.msra.mxu0 %v35
    %61 = vmatprep.subr.mxu0 0.0
    %62 = vmatpush1.msra.mxu0 %v36
    %63 = vmatprep.subr.mxu0 0.0
    %64 = vmatpush1.msra.mxu0 %v37
    %65 = vmatprep.subr.mxu0 0.0
    %66 = vmatpush1.msra.mxu0 %v38
    %67 = vmatprep.subr.mxu0 0.0
    %68 = vmatpush1.msra.mxu0 %v39
    %69 = vmatprep.subr.mxu0 0.0
    %70 = vmatpush1.msra.mxu0 %v40
    %71 = vmatprep.subr.mxu0 0.0
    %72 = vmatpush1.msra.mxu0 %v41
    %73 = vmatprep.subr.mxu0 0.0
    %74 = vmatpush1.msra.mxu0 %v42
    %75 = vmatprep.subr.mxu0 0.0
    %76 = vmatpush1.msra.mxu0 %v43
    %77 = vmatprep.subr.mxu0 0.0
    %78 = vmatpush1.msra.mxu0 %v44
    %79 = vmatprep.subr.mxu0 0.0
    %80 = vmatpush1.msra.mxu0 %v45
    %81 = vmatprep.subr.mxu0 0.0
    %82 = vmatpush1.msra.mxu0 %v46
    %83 = vmatprep.subr.mxu0 0.0
    %84 = vmatpush1.msra.mxu0 0.0
    %85 = vmatprep.subr.mxu0 0.0
    %86 = vmatpush1.msra.mxu0 0.0
    %87 = vmatprep.subr.mxu0 0.0
    %88 = vmatpush1.msra.mxu0 0.0
    %89 = vmatprep.subr.mxu0 0.0
    %90 = vmatpush1.msra.mxu0 0.0
    %91 = vmatprep.subr.mxu0 0.0
    %92 = vmatpush1.msra.mxu0 0.0
    %93 = vmatprep.subr.mxu0 0.0
    %94 = vmatpush1.msra.mxu0 0.0
    %95 = vmatprep.subr.mxu0 0.0
    %96 = vmatpush1.msra.mxu0 0.0
    %97 = vmatprep.subr.mxu0 0.0
    %98 = vmatpush1.msra.mxu0 0.0
    %99 = vmatprep.subr.mxu0 0.0
    %100 = vmatpush1.msra.mxu0 0.0
    %101 = vmatprep.subr.mxu0 0.0
    %102 = vmatpush1.msra.mxu0 0.0
    %103 = vmatprep.subr.mxu0 0.0
    %104 = vmatpush1.msra.mxu0 0.0
    %105 = vmatprep.subr.mxu0 0.0
    %106 = vmatpush1.msra.mxu0 0.0
    %107 = vmatprep.subr.mxu0 0.0
    %108 = vmatpush1.msra.mxu0 0.0
    %109 = vmatprep.subr.mxu0 0.0
    %110 = vmatpush1.msra.mxu0 0.0
    %111 = vmatprep.subr.mxu0 0.0
    %112 = vmatpush1.msra.mxu0 0.0
    %113 = vmatprep.subr.mxu0 0.0
    %114 = vmatpush1.msra.mxu0 0.0
    %115 = vmatprep.mubr.f32.mxu0 0.0
    %116 = vmatmul.mubr.f32.gmra.mrb[0].mxu0 %v29
    %v117 = vpop.f32.mrb[0].mxu0
    %v118 = vadd.f32 %v50, %v117
    %v119 = vpop.f32.mrb[0].mxu0
    %120 = vdwg.mxu0
    %121 = vadd.xlane.f32.xlu0 %v118
    %v122 = vpop.xlane.xlu0 %121
    %v123 = vmul.f32 %v122, 0.03125
    %v124 = vmul.f32 %v118, %v118
    %125 = vadd.xlane.f32.xlu0 %v124
    %v126 = vpop.xlane.xlu0 %125
    %v127 = vmul.f32 %v126, 0.03125
    %v128 = vmul.f32 %v123, %v123
    %v129 = vsub.f32 %v127, %v128
    %v130 = vmax.f32 %v129, 0.0
    %v131 = vadd.f32 %v130, 1e-05
    %v132 = vrsqrt.pop %v131
    %v133 = vsub.f32 %v118, %v123
    %v134 = vmul.f32 %v133, %v132
    %v135 = vlaneseq
    %v136 = vshrl.u32 %v135, 7
    %v137 = vsub.s32 1, %v136
    %v138 = vrot.slane %v30, %v137
    %v139 = vmul.f32 %v134, %v138
    %v140 = vlaneseq
    %v141 = vshrl.u32 %v140, 7
    %v142 = vsub.s32 2, %v141
    %v143 = vrot.slane %v30, %v142
    %v144 = vadd.f32 %v139, %v143
    %v145 = vmax.f32 %v144, 0.0
    %s146 = scalar_lea.vmem [#allocation2], 128
    %v147 = vld [vmem:[%s146] sm:$0xff]
    %v148 = vld [vmem:[%s146 + $0x8] sm:$0xff]
    %v149 = vld [vmem:[%s146 + $0x10] sm:$0xff]
    %v150 = vld [vmem:[%s146 + $0x18] sm:$0xff]
    %v151 = vld [vmem:[%s146 + $0x20] sm:$0xff]
    %v152 = vld [vmem:[%s146 + $0x28] sm:$0xff]
    %v153 = vld [vmem:[%s146 + $0x30] sm:$0xff]
    %v154 = vld [vmem:[%s146 + $0x38] sm:$0xff]
    %v155 = vld [vmem:[%s146 + $0x40] sm:$0xff]
    %v156 = vld [vmem:[%s146 + $0x48] sm:$0xff]
    %v157 = vld [vmem:[%s146 + $0x50] sm:$0xff]
    %v158 = vld [vmem:[%s146 + $0x58] sm:$0xff]
    %v159 = vld [vmem:[%s146 + $0x60] sm:$0xff]
    %v160 = vld [vmem:[%s146 + $0x68] sm:$0xff]
    %v161 = vld [vmem:[%s146 + $0x70] sm:$0xff]
    %v162 = vld [vmem:[%s146 + $0x78] sm:$0xff]
    %v163 = vlaneseq
    %v164 = vshrl.u32 %v163, 7
    %v165 = vsub.s32 3, %v164
    %v166 = vrot.slane %v30, %v165
    %167 = vmatprep.subr.mxu0 0.0
    %168 = vmatpush1.msra.mxu0 %v147
    %169 = vmatprep.subr.mxu0 0.0
    %170 = vmatpush1.msra.mxu0 %v148
    %171 = vmatprep.subr.mxu0 0.0
    %172 = vmatpush1.msra.mxu0 %v149
    %173 = vmatprep.subr.mxu0 0.0
    %174 = vmatpush1.msra.mxu0 %v150
    %175 = vmatprep.subr.mxu0 0.0
    %176 = vmatpush1.msra.mxu0 %v151
    %177 = vmatprep.subr.mxu0 0.0
    %178 = vmatpush1.msra.mxu0 %v152
    %179 = vmatprep.subr.mxu0 0.0
    %180 = vmatpush1.msra.mxu0 %v153
    %181 = vmatprep.subr.mxu0 0.0
    %182 = vmatpush1.msra.mxu0 %v154
    %183 = vmatprep.subr.mxu0 0.0
    %184 = vmatpush1.msra.mxu0 %v155
    %185 = vmatprep.subr.mxu0 0.0
    %186 = vmatpush1.msra.mxu0 %v156
    %187 = vmatprep.subr.mxu0 0.0
    %188 = vmatpush1.msra.mxu0 %v157
    %189 = vmatprep.subr.mxu0 0.0
    %190 = vmatpush1.msra.mxu0 %v158
    %191 = vmatprep.subr.mxu0 0.0
    %192 = vmatpush1.msra.mxu0 %v159
    %193 = vmatprep.subr.mxu0 0.0
    %194 = vmatpush1.msra.mxu0 %v160
    %195 = vmatprep.subr.mxu0 0.0
    %196 = vmatpush1.msra.mxu0 %v161
    %197 = vmatprep.subr.mxu0 0.0
    %198 = vmatpush1.msra.mxu0 %v162
    %199 = vmatprep.subr.mxu0 0.0
    %200 = vmatpush1.msra.mxu0 0.0
    %201 = vmatprep.subr.mxu0 0.0
    %202 = vmatpush1.msra.mxu0 0.0
    %203 = vmatprep.subr.mxu0 0.0
    %204 = vmatpush1.msra.mxu0 0.0
    %205 = vmatprep.subr.mxu0 0.0
    %206 = vmatpush1.msra.mxu0 0.0
    %207 = vmatprep.subr.mxu0 0.0
    %208 = vmatpush1.msra.mxu0 0.0
    %209 = vmatprep.subr.mxu0 0.0
    %210 = vmatpush1.msra.mxu0 0.0
    %211 = vmatprep.subr.mxu0 0.0
    %212 = vmatpush1.msra.mxu0 0.0
    %213 = vmatprep.subr.mxu0 0.0
    %214 = vmatpush1.msra.mxu0 0.0
    %215 = vmatprep.subr.mxu0 0.0
    %216 = vmatpush1.msra.mxu0 0.0
    %217 = vmatprep.subr.mxu0 0.0
    %218 = vmatpush1.msra.mxu0 0.0
    %219 = vmatprep.subr.mxu0 0.0
    %220 = vmatpush1.msra.mxu0 0.0
    %221 = vmatprep.subr.mxu0 0.0
    %222 = vmatpush1.msra.mxu0 0.0
    %223 = vmatprep.subr.mxu0 0.0
    %224 = vmatpush1.msra.mxu0 0.0
    %225 = vmatprep.subr.mxu0 0.0
    %226 = vmatpush1.msra.mxu0 0.0
    %227 = vmatprep.subr.mxu0 0.0
    %228 = vmatpush1.msra.mxu0 0.0
    %229 = vmatprep.subr.mxu0 0.0
    %230 = vmatpush1.msra.mxu0 0.0
    %231 = vmatprep.mubr.f32.mxu0 0.0
    %232 = vmatmul.mubr.f32.gmra.mrb[0].mxu0 %v145
    %v233 = vpop.f32.mrb[0].mxu0
    %v234 = vadd.f32 %v166, %v233
    %v235 = vpop.f32.mrb[0].mxu0
    %236 = vdwg.mxu0
    %237 = vadd.xlane.f32.xlu0 %v234
    %v238 = vpop.xlane.xlu0 %237
    %v239 = vmul.f32 %v238, 0.03125
    %v240 = vmul.f32 %v234, %v234
    %241 = vadd.xlane.f32.xlu0 %v240
    %v242 = vpop.xlane.xlu0 %241
    %v243 = vmul.f32 %v242, 0.03125
    %v244 = vmul.f32 %v239, %v239
    %v245 = vsub.f32 %v243, %v244
    %v246 = vmax.f32 %v245, 0.0
    %v247 = vadd.f32 %v246, 1e-05
    %v248 = vrsqrt.pop %v247
    %v249 = vsub.f32 %v234, %v239
    %v250 = vmul.f32 %v249, %v248
    %v251 = vlaneseq
    %v252 = vshrl.u32 %v251, 7
    %v253 = vsub.s32 4, %v252
    %v254 = vrot.slane %v30, %v253
    %v255 = vmul.f32 %v250, %v254
    %v256 = vlaneseq
    %v257 = vshrl.u32 %v256, 7
    %v258 = vsub.s32 5, %v257
    %v259 = vrot.slane %v30, %v258
    %v260 = vadd.f32 %v255, %v259
    %v261 = vmax.f32 %v260, 0.0
    %s262 = scalar_lea.vmem [#allocation2], 256
    %v263 = vld [vmem:[%s262] sm:$0xff]
    %v264 = vld [vmem:[%s262 + $0x8] sm:$0xff]
    %v265 = vld [vmem:[%s262 + $0x10] sm:$0xff]
    %v266 = vld [vmem:[%s262 + $0x18] sm:$0xff]
    %v267 = vld [vmem:[%s262 + $0x20] sm:$0xff]
    %v268 = vld [vmem:[%s262 + $0x28] sm:$0xff]
    %v269 = vld [vmem:[%s262 + $0x30] sm:$0xff]
    %v270 = vld [vmem:[%s262 + $0x38] sm:$0xff]
    %v271 = vld [vmem:[%s262 + $0x40] sm:$0xff]
    %v272 = vld [vmem:[%s262 + $0x48] sm:$0xff]
    %v273 = vld [vmem:[%s262 + $0x50] sm:$0xff]
    %v274 = vld [vmem:[%s262 + $0x58] sm:$0xff]
    %v275 = vld [vmem:[%s262 + $0x60] sm:$0xff]
    %v276 = vld [vmem:[%s262 + $0x68] sm:$0xff]
    %v277 = vld [vmem:[%s262 + $0x70] sm:$0xff]
    %v278 = vld [vmem:[%s262 + $0x78] sm:$0xff]
    %v279 = vlaneseq
    %v280 = vshrl.u32 %v279, 7
    %v281 = vsub.s32 6, %v280
    %v282 = vrot.slane %v30, %v281
    %283 = vmatprep.subr.mxu0 0.0
    %284 = vmatpush1.msra.mxu0 %v263
    %285 = vmatprep.subr.mxu0 0.0
    %286 = vmatpush1.msra.mxu0 %v264
    %287 = vmatprep.subr.mxu0 0.0
    %288 = vmatpush1.msra.mxu0 %v265
    %289 = vmatprep.subr.mxu0 0.0
    %290 = vmatpush1.msra.mxu0 %v266
    %291 = vmatprep.subr.mxu0 0.0
    %292 = vmatpush1.msra.mxu0 %v267
    %293 = vmatprep.subr.mxu0 0.0
    %294 = vmatpush1.msra.mxu0 %v268
    %295 = vmatprep.subr.mxu0 0.0
    %296 = vmatpush1.msra.mxu0 %v269
    %297 = vmatprep.subr.mxu0 0.0
    %298 = vmatpush1.msra.mxu0 %v270
    %299 = vmatprep.subr.mxu0 0.0
    %300 = vmatpush1.msra.mxu0 %v271
    %301 = vmatprep.subr.mxu0 0.0
    %302 = vmatpush1.msra.mxu0 %v272
    %303 = vmatprep.subr.mxu0 0.0
    %304 = vmatpush1.msra.mxu0 %v273
    %305 = vmatprep.subr.mxu0 0.0
    %306 = vmatpush1.msra.mxu0 %v274
    %307 = vmatprep.subr.mxu0 0.0
    %308 = vmatpush1.msra.mxu0 %v275
    %309 = vmatprep.subr.mxu0 0.0
    %310 = vmatpush1.msra.mxu0 %v276
    %311 = vmatprep.subr.mxu0 0.0
    %312 = vmatpush1.msra.mxu0 %v277
    %313 = vmatprep.subr.mxu0 0.0
    %314 = vmatpush1.msra.mxu0 %v278
    %315 = vmatprep.subr.mxu0 0.0
    %316 = vmatpush1.msra.mxu0 0.0
    %317 = vmatprep.subr.mxu0 0.0
    %318 = vmatpush1.msra.mxu0 0.0
    %319 = vmatprep.subr.mxu0 0.0
    %320 = vmatpush1.msra.mxu0 0.0
    %321 = vmatprep.subr.mxu0 0.0
    %322 = vmatpush1.msra.mxu0 0.0
    %323 = vmatprep.subr.mxu0 0.0
    %324 = vmatpush1.msra.mxu0 0.0
    %325 = vmatprep.subr.mxu0 0.0
    %326 = vmatpush1.msra.mxu0 0.0
    %327 = vmatprep.subr.mxu0 0.0
    %328 = vmatpush1.msra.mxu0 0.0
    %329 = vmatprep.subr.mxu0 0.0
    %330 = vmatpush1.msra.mxu0 0.0
    %331 = vmatprep.subr.mxu0 0.0
    %332 = vmatpush1.msra.mxu0 0.0
    %333 = vmatprep.subr.mxu0 0.0
    %334 = vmatpush1.msra.mxu0 0.0
    %335 = vmatprep.subr.mxu0 0.0
    %336 = vmatpush1.msra.mxu0 0.0
    %337 = vmatprep.subr.mxu0 0.0
    %338 = vmatpush1.msra.mxu0 0.0
    %339 = vmatprep.subr.mxu0 0.0
    %340 = vmatpush1.msra.mxu0 0.0
    %341 = vmatprep.subr.mxu0 0.0
    %342 = vmatpush1.msra.mxu0 0.0
    %343 = vmatprep.subr.mxu0 0.0
    %344 = vmatpush1.msra.mxu0 0.0
    %345 = vmatprep.subr.mxu0 0.0
    %346 = vmatpush1.msra.mxu0 0.0
    %347 = vmatprep.mubr.f32.mxu0 0.0
    %348 = vmatmul.mubr.f32.gmra.mrb[0].mxu0 %v261
    %v349 = vpop.f32.mrb[0].mxu0
    %v350 = vadd.f32 %v282, %v349
    %v351 = vpop.f32.mrb[0].mxu0
    %352 = vdwg.mxu0
    %v353 = vtanh.pop %v350
    %354 = vst [vmem:[#allocation5] sm:$0xff] %v353
    // Predicated region
    $region18: #{actor_forward.1} parent=1 // pred_check
      _
    $region19: #{actor_forward.1} parent=1 // pred_check_branch
      %356 = sbr.rel (0) target = $region21
    $region20: #{actor_forward.1} parent=1 // pred_region
      %s358 = ssub.s32 128, 128
      %359 = vsyncadd [#allocation4], %s358
      %s361 = sshll.u32 [#allocation5], 4
      %s362 = int_to_ptr.vmem [resolvable:$true] %s361
      %364 = dma.vmem_to_hbm [thread:$0]  %s362, 128, %s3, [#allocation4]
    $region21: #{actor_forward.1} parent=1 // pred_fallthru
      _
    // Predicated region
    $region22: #{actor_forward.1} parent=1 // pred_check
      _
    $region23: #{actor_forward.1} parent=1 // pred_check_branch
      %366 = sbr.rel (0) target = $region25
    $region24: #{actor_forward.1} parent=1 // pred_region
      %367 = dma.done [#allocation4], 128
    $region25: #{actor_forward.1} parent=1 // pred_fallthru
      _
    %368 = vsyncpa [#allocation3], 1
    %369 = vsyncpa [#allocation4], 1

</llo_original>
